<compile_context>
chip_gen: v5e
topology: v5e:2x2
jax: 0.10.0
libtpu: 0.0.40
codegen_flags: <defaults>
</compile_context>

<pallas_src>
import functools

import jax
import jax.numpy as jnp
from jax.experimental import pallas as pl
from jax.experimental.pallas import tpu as pltpu


def _round_up(a, b):
    return ((a + b - 1) // b) * b


# ---------------------------------------------------------------------------
# Kernel
#   mu_ref, sigma_ref : (tm, D)   streamed activations (input dtype)
#   eps_ref           : (tm, O)   reparameterization noise
#   w_mu1, w_sg1      : (D, D)
#   w_c1, w_c2        : (2D, 2D)
#   w_split           : (2D, 2D)  = [W_split_mu | W_split_sigma]
#   w_out             : (2D, W)   = blockdiag(W_out_mu, W_out_sigma) + zero pad
#   out_ref           : (tm, W)   = [sampled || logits_sigma || 0-pad], W % 128 == 0
# ---------------------------------------------------------------------------
def _prob_output_kernel(mu_ref, sigma_ref, eps_ref,
                        w_mu1_ref, w_sg1_ref, w_c1_ref, w_c2_ref,
                        w_split_ref, w_out_ref, out_ref, *, out_dim):
    f32 = jnp.float32
    relu = lambda v: jnp.maximum(v, 0.0)
    cdt = w_c1_ref.dtype  # MXU operand dtype (f32 or bf16); accumulation is f32

    # layer 1: two un-fused matmuls + in-VMEM lane concat (no block-diag zeros)
    mu1 = relu(jnp.dot(mu_ref[...].astype(cdt), w_mu1_ref[...],
                       preferred_element_type=f32))
    sg1 = relu(jnp.dot(sigma_ref[...].astype(cdt), w_sg1_ref[...],
                       preferred_element_type=f32))
    h = jnp.concatenate([mu1, sg1], axis=-1).astype(cdt)

    # combined1 / combined2 / fused split heads
    h = relu(jnp.dot(h, w_c1_ref[...], preferred_element_type=f32)).astype(cdt)
    h = relu(jnp.dot(h, w_c2_ref[...], preferred_element_type=f32)).astype(cdt)
    h = relu(jnp.dot(h, w_split_ref[...], preferred_element_type=f32)).astype(cdt)

    # fused output projection -> (tm, W) with layout [out_mu | out_sigma | 0]
    h5 = jnp.dot(h, w_out_ref[...], preferred_element_type=f32)

    o = out_dim
    out_mu = h5[:, :o]
    out_sigma = h5[:, o:2 * o]

    # numerically stable softplus (f32) + 1e-6
    logits_sigma = (jnp.maximum(out_sigma, 0.0)
                    + jnp.log1p(jnp.exp(-jnp.abs(out_sigma))) + 1e-6)
    # reparameterization sample (eps == 0 recovers sampled == out_mu exactly)
    sampled = out_mu + logits_sigma * eps_ref[...].astype(f32)

    # single lane-dense (tm, W) slab; W is a multiple of 128 -> unmasked stores
    pad = out_ref.shape[-1] - 2 * o
    pieces = [sampled, logits_sigma]
    if pad:
        pieces.append(jnp.zeros((sampled.shape[0], pad), f32))
    out_ref[...] = jnp.concatenate(pieces, axis=-1).astype(out_ref.dtype)


# ---------------------------------------------------------------------------
# Weight preparation — call ONCE at parameter-load time (hoisted out of the
# per-step forward per the perf review) and cache the result.
# ---------------------------------------------------------------------------
def prepare_params(params, compute_dtype=jnp.float32):
    D = params["w_mu1"].shape[0]
    O = params["w_out_mu"].shape[1]
    out_width = _round_up(2 * O, 128)          # lane-dense output slab width

    w_split = jnp.concatenate([params["w_split_mu"], params["w_split_sigma"]],
                              axis=1)                              # (2D, 2D)
    w_out = jnp.zeros((2 * D, out_width), jnp.float32)             # (2D, W)
    w_out = w_out.at[:D, :O].set(params["w_out_mu"])
    w_out = w_out.at[D:, O:2 * O].set(params["w_out_sigma"])

    ws = (params["w_mu1"], params["w_sigma1"], params["w_c1"], params["w_c2"],
          w_split, w_out)
    return tuple(jnp.asarray(w, dtype=compute_dtype) for w in ws)


# ---------------------------------------------------------------------------
# Forward wrapper
# ---------------------------------------------------------------------------
@functools.partial(jax.jit, static_argnames=("tm", "out_dtype"))
def prob_output_layer2(mu, sigma, eps, fused_weights, *, tm=1024,
                       out_dtype=jnp.float32):
    """mu, sigma: (..., D); eps: (..., O). Returns (sampled, logits_sigma)."""
    w_mu1, w_sg1, w_c1, w_c2, w_split, w_out = fused_weights
    *lead, D = mu.shape
    O = eps.shape[-1]
    out_width = w_out.shape[-1]
    N = 1
    for s in lead:
        N *= s

    # reshapes only (metadata); no concat / pad / cast HBM passes
    mu2 = mu.reshape(N, D)
    sg2 = sigma.reshape(N, D)
    eps2 = eps.reshape(N, O)

    # ---- row-tile selection under an explicit VMEM budget (v7x: 64 MiB) ----
    cd_b = jnp.dtype(w_c1.dtype).itemsize
    in_b = jnp.dtype(mu.dtype).itemsize
    eps_b = jnp.dtype(eps.dtype).itemsize
    out_b = jnp.dtype(out_dtype).itemsize
    w_bytes = sum(int(w.shape[0]) * int(w.shape[1]) * cd_b for w in fused_weights)
    # double-buffered streamed bytes per row (mu + sigma + eps + out slab)
    per_row = 2 * (2 * D * in_b + O * eps_b + out_width * out_b)
    budget = 40 << 20
    tm_cap = max(8, ((budget - 2 * w_bytes - (4 << 20)) // per_row) // 8 * 8)
    tm_req = min(tm, tm_cap)
    if N <= tm_req:
        tm_eff = N                      # single block == full rows (always legal)
    else:
        tm_eff = max(8, (tm_req // 8) * 8)
    grid = (pl.cdiv(N, tm_eff),)        # ragged final block handled by Pallas

    vmem_limit = int(min(48 << 20,
                         max(32 << 20, 2 * w_bytes + per_row * tm_eff + (8 << 20))))

    in_specs = [
        pl.BlockSpec((tm_eff, D), lambda i: (i, 0)),        # mu
        pl.BlockSpec((tm_eff, D), lambda i: (i, 0)),        # sigma
        pl.BlockSpec((tm_eff, O), lambda i: (i, 0)),        # eps
    ] + [pl.BlockSpec(w.shape, lambda i: (0, 0)) for w in fused_weights]
    out_specs = pl.BlockSpec((tm_eff, out_width), lambda i: (i, 0))

    flops = int(2 * N * (14 * D * D + 2 * D * out_width))
    bytes_accessed = int(N * (2 * D * in_b + O * eps_b + out_width * out_b)
                         + w_bytes)
    cost = pl.CostEstimate(flops=flops, transcendentals=2 * N * O,
                           bytes_accessed=bytes_accessed)

    slab = pl.pallas_call(
        functools.partial(_prob_output_kernel, out_dim=O),
        out_shape=jax.ShapeDtypeStruct((N, out_width), out_dtype),
        grid_spec=pltpu.PrefetchScalarGridSpec(
            num_scalar_prefetch=0,
            grid=grid,
            in_specs=in_specs,
            out_specs=out_specs,
        ),
        compiler_params=pltpu.CompilerParams(
            dimension_semantics=("parallel",),
            vmem_limit_bytes=vmem_limit),
        cost_estimate=cost,
    )(mu2, sg2, eps2, *fused_weights)

    sampled = slab[:, :O].reshape(*lead, O)
    logits_sigma = slab[:, O:2 * O].reshape(*lead, O)
    return sampled, logits_sigma


# ---------------------------------------------------------------------------
# Parameter init (PyTorch-Linear-style uniform(-1/sqrt(in), +1/sqrt(in))).
# Weights are stored pre-transposed: (in_features, out_features).
# ---------------------------------------------------------------------------
def init_params(key, input_dim, output_dim):
    shapes = {
        "w_mu1":         (input_dim, input_dim),
        "w_sigma1":      (input_dim, input_dim),
        "w_c1":          (2 * input_dim, 2 * input_dim),
        "w_c2":          (2 * input_dim, 2 * input_dim),
        "w_split_mu":    (2 * input_dim, input_dim),
        "w_split_sigma": (2 * input_dim, input_dim),
        "w_out_mu":      (input_dim, output_dim),
        "w_out_sigma":   (input_dim, output_dim),
    }
    params = {}
    keys = jax.random.split(key, len(shapes))
    for k, (name, shp) in zip(keys, shapes.items()):
        bound = 1.0 / jnp.sqrt(shp[0])
        params[name] = jax.random.uniform(
            k, shp, dtype=jnp.float32, minval=-bound, maxval=bound)
    return params


# ---------------------------------------------------------------------------
# Pure-JAX reference (mirrors the PyTorch forward) for correctness check
# ---------------------------------------------------------------------------
def reference_forward(mu, sigma, eps, p):
    relu = lambda x: jnp.maximum(x, 0.0)
    mu1 = relu(mu @ p["w_mu1"])
    sg1 = relu(sigma @ p["w_sigma1"])
    comb = jnp.concatenate([mu1, sg1], axis=-1)
    c1 = relu(comb @ p["w_c1"])
    c2 = relu(c1 @ p["w_c2"])
    ms = relu(c2 @ p["w_split_mu"])
    ss = relu(c2 @ p["w_split_sigma"])
    out_mu = ms @ p["w_out_mu"]
    out_sigma = ss @ p["w_out_sigma"]
    logits_sigma = jax.nn.softplus(out_sigma) + 1e-6
    sampled = out_mu + logits_sigma * eps
    return sampled, logits_sigma


# ---------------------------------------------------------------------------
if __name__ == "__main__":
    batch, seq, input_dim, output_dim = 2, 8, 32, 32

    key = jax.random.PRNGKey(0)
    k_mu, k_sigma, k_eps, k_params, k_mu2, k_sg2, k_eps2 = jax.random.split(key, 7)

    mu = jax.random.normal(k_mu, (batch, seq, input_dim), dtype=jnp.float32)
    sigma = jax.random.normal(k_sigma, (batch, seq, input_dim), dtype=jnp.float32)
    eps = jax.random.normal(k_eps, (batch, seq, output_dim), dtype=jnp.float32)

    params = init_params(k_params, input_dim, output_dim)

    # Fuse + cast weights ONCE (cached), per the perf review.
    w_f32 = prepare_params(params, jnp.float32)
    w_bf16 = prepare_params(params, jnp.bfloat16)

    # --- f32 path (training=True): exact vs. reference ---------------------
    sampled, logits = prob_output_layer2(mu, sigma, eps, w_f32)
    sampled = jax.block_until_ready(sampled)
    logits = jax.block_until_ready(logits)

    ref_sampled, ref_logits = reference_forward(mu, sigma, eps, params)
    assert jnp.allclose(sampled, ref_sampled, atol=1e-5, rtol=1e-5)
    assert jnp.allclose(logits, ref_logits, atol=1e-5, rtol=1e-5)

    # --- eval mode (training=False): eps = 0 => sampled == out_mu ----------
    s_eval, _ = prob_output_layer2(mu, sigma, jnp.zeros_like(eps), w_f32)
    s_eval = jax.block_until_ready(s_eval)
    ref_s_eval, _ = reference_forward(mu, sigma, jnp.zeros_like(eps), params)
    assert jnp.allclose(s_eval, ref_s_eval, atol=1e-5, rtol=1e-5)

    # --- ragged multi-block grid (N not a multiple of tm; no HBM padding) ---
    b2, s2 = 3, 25                      # N = 75, tm=64 -> 2 blocks, last ragged
    mu_r = jax.random.normal(k_mu2, (b2, s2, input_dim), dtype=jnp.float32)
    sg_r = jax.random.normal(k_sg2, (b2, s2, input_dim), dtype=jnp.float32)
    ep_r = jax.random.normal(k_eps2, (b2, s2, output_dim), dtype=jnp.float32)
    sp_r, lg_r = prob_output_layer2(mu_r, sg_r, ep_r, w_f32, tm=64)
    sp_r = jax.block_until_ready(sp_r)
    ref_sp_r, ref_lg_r = reference_forward(mu_r, sg_r, ep_r, params)
    assert jnp.allclose(sp_r, ref_sp_r, atol=1e-5, rtol=1e-5)
    assert jnp.allclose(lg_r, ref_lg_r, atol=1e-5, rtol=1e-5)

    # --- bf16 MXU-operand path (all generations incl. v5e); loose tolerance -
    s_bf16, l_bf16 = prob_output_layer2(mu, sigma, eps, w_bf16)
    s_bf16 = jax.block_until_ready(s_bf16)
    l_bf16 = jax.block_until_ready(l_bf16)
    assert jnp.allclose(s_bf16, ref_sampled, atol=1.5e-1, rtol=1.5e-1)
    assert jnp.allclose(l_bf16, ref_logits, atol=1.5e-1, rtol=1.5e-1)

    print("KERNEL_OK")
</pallas_src>

<mosaic_0001>
module attributes {stable_mosaic.version = 11 : i64} {
  func.func @_prob_output_kernel(%arg0: i32, %arg1: memref<16x32xf32, #tpu.memory_space<vmem>>, %arg2: memref<16x32xf32, #tpu.memory_space<vmem>>, %arg3: memref<16x32xf32, #tpu.memory_space<vmem>>, %arg4: memref<32x32xf32, #tpu.memory_space<vmem>>, %arg5: memref<32x32xf32, #tpu.memory_space<vmem>>, %arg6: memref<64x64xf32, #tpu.memory_space<vmem>>, %arg7: memref<64x64xf32, #tpu.memory_space<vmem>>, %arg8: memref<64x64xf32, #tpu.memory_space<vmem>>, %arg9: memref<64x128xf32, #tpu.memory_space<vmem>>, %arg10: memref<16x128xf32, #tpu.memory_space<vmem>>) attributes {dimension_semantics = [#tpu.dimension_semantics<parallel>], iteration_bounds = array<i64: 1>, scalar_prefetch = 0 : i64, scratch_operands = 0 : i64, tpu.core_type = #tpu.core_type<tc>, window_params = [{transform_indices = @transform_0, window_bounds = array<i64: 16, 32>}, {transform_indices = @transform_1, window_bounds = array<i64: 16, 32>}, {transform_indices = @transform_2, window_bounds = array<i64: 16, 32>}, {pipeline_mode = #tpu.pipeline_mode<synchronous>, transform_indices = @transform_3, window_bounds = array<i64: 32, 32>}, {pipeline_mode = #tpu.pipeline_mode<synchronous>, transform_indices = @transform_4, window_bounds = array<i64: 32, 32>}, {pipeline_mode = #tpu.pipeline_mode<synchronous>, transform_indices = @transform_5, window_bounds = array<i64: 64, 64>}, {pipeline_mode = #tpu.pipeline_mode<synchronous>, transform_indices = @transform_6, window_bounds = array<i64: 64, 64>}, {pipeline_mode = #tpu.pipeline_mode<synchronous>, transform_indices = @transform_7, window_bounds = array<i64: 64, 64>}, {pipeline_mode = #tpu.pipeline_mode<synchronous>, transform_indices = @transform_8, window_bounds = array<i64: 64, 128>}, {transform_indices = @transform_9, window_bounds = array<i64: 16, 128>}]} {
    %c0 = arith.constant 0 : index
    %c0_0 = arith.constant 0 : index
    %0 = vector.load %arg1[%c0, %c0_0] : memref<16x32xf32, #tpu.memory_space<vmem>>, vector<16x32xf32>
    %c0_1 = arith.constant 0 : index
    %c0_2 = arith.constant 0 : index
    %1 = vector.load %arg4[%c0_1, %c0_2] : memref<32x32xf32, #tpu.memory_space<vmem>>, vector<32x32xf32>
    %cst = arith.constant dense<0.000000e+00> : vector<16x32xf32>
    %2 = tpu.matmul %0, %1, %cst {dimension_numbers = #tpu.dot_dimension_numbers<[1], [0], [0], [1], [0, 0, 1, 1], [], []>} : vector<16x32xf32>, vector<32x32xf32>, vector<16x32xf32> -> vector<16x32xf32>
    %cst_3 = arith.constant 0.000000e+00 : f32
    %3 = vector.broadcast %cst_3 : f32 to vector<16x32xf32>
    %4 = arith.maximumf %2, %3 : vector<16x32xf32>
    %c0_4 = arith.constant 0 : index
    %c0_5 = arith.constant 0 : index
    %5 = vector.load %arg2[%c0_4, %c0_5] : memref<16x32xf32, #tpu.memory_space<vmem>>, vector<16x32xf32>
    %c0_6 = arith.constant 0 : index
    %c0_7 = arith.constant 0 : index
    %6 = vector.load %arg5[%c0_6, %c0_7] : memref<32x32xf32, #tpu.memory_space<vmem>>, vector<32x32xf32>
    %cst_8 = arith.constant dense<0.000000e+00> : vector<16x32xf32>
    %7 = tpu.matmul %5, %6, %cst_8 {dimension_numbers = #tpu.dot_dimension_numbers<[1], [0], [0], [1], [0, 0, 1, 1], [], []>} : vector<16x32xf32>, vector<32x32xf32>, vector<16x32xf32> -> vector<16x32xf32>
    %cst_9 = arith.constant 0.000000e+00 : f32
    %8 = vector.broadcast %cst_9 : f32 to vector<16x32xf32>
    %9 = arith.maximumf %7, %8 : vector<16x32xf32>
    %10 = tpu.concatenate %4, %9 in 1 : vector<16x32xf32>, vector<16x32xf32> -> vector<16x64xf32>
    %c0_10 = arith.constant 0 : index
    %c0_11 = arith.constant 0 : index
    %11 = vector.load %arg6[%c0_10, %c0_11] : memref<64x64xf32, #tpu.memory_space<vmem>>, vector<64x64xf32>
    %cst_12 = arith.constant dense<0.000000e+00> : vector<16x64xf32>
    %12 = tpu.matmul %10, %11, %cst_12 {dimension_numbers = #tpu.dot_dimension_numbers<[1], [0], [0], [1], [0, 0, 1, 1], [], []>} : vector<16x64xf32>, vector<64x64xf32>, vector<16x64xf32> -> vector<16x64xf32>
    %cst_13 = arith.constant 0.000000e+00 : f32
    %13 = vector.broadcast %cst_13 : f32 to vector<16x64xf32>
    %14 = arith.maximumf %12, %13 : vector<16x64xf32>
    %c0_14 = arith.constant 0 : index
    %c0_15 = arith.constant 0 : index
    %15 = vector.load %arg7[%c0_14, %c0_15] : memref<64x64xf32, #tpu.memory_space<vmem>>, vector<64x64xf32>
    %cst_16 = arith.constant dense<0.000000e+00> : vector<16x64xf32>
    %16 = tpu.matmul %14, %15, %cst_16 {dimension_numbers = #tpu.dot_dimension_numbers<[1], [0], [0], [1], [0, 0, 1, 1], [], []>} : vector<16x64xf32>, vector<64x64xf32>, vector<16x64xf32> -> vector<16x64xf32>
    %cst_17 = arith.constant 0.000000e+00 : f32
    %17 = vector.broadcast %cst_17 : f32 to vector<16x64xf32>
    %18 = arith.maximumf %16, %17 : vector<16x64xf32>
    %c0_18 = arith.constant 0 : index
    %c0_19 = arith.constant 0 : index
    %19 = vector.load %arg8[%c0_18, %c0_19] : memref<64x64xf32, #tpu.memory_space<vmem>>, vector<64x64xf32>
    %cst_20 = arith.constant dense<0.000000e+00> : vector<16x64xf32>
    %20 = tpu.matmul %18, %19, %cst_20 {dimension_numbers = #tpu.dot_dimension_numbers<[1], [0], [0], [1], [0, 0, 1, 1], [], []>} : vector<16x64xf32>, vector<64x64xf32>, vector<16x64xf32> -> vector<16x64xf32>
    %cst_21 = arith.constant 0.000000e+00 : f32
    %21 = vector.broadcast %cst_21 : f32 to vector<16x64xf32>
    %22 = arith.maximumf %20, %21 : vector<16x64xf32>
    %c0_22 = arith.constant 0 : index
    %c0_23 = arith.constant 0 : index
    %23 = vector.load %arg9[%c0_22, %c0_23] : memref<64x128xf32, #tpu.memory_space<vmem>>, vector<64x128xf32>
    %cst_24 = arith.constant dense<0.000000e+00> : vector<16x128xf32>
    %24 = tpu.matmul %22, %23, %cst_24 {dimension_numbers = #tpu.dot_dimension_numbers<[1], [0], [0], [1], [0, 0, 1, 1], [], []>} : vector<16x64xf32>, vector<64x128xf32>, vector<16x128xf32> -> vector<16x128xf32>
    %25 = vector.extract_strided_slice %24 {offsets = [0, 0], sizes = [16, 32], strides = [1, 1]} : vector<16x128xf32> to vector<16x32xf32>
    %26 = vector.extract_strided_slice %24 {offsets = [0, 32], sizes = [16, 32], strides = [1, 1]} : vector<16x128xf32> to vector<16x32xf32>
    %cst_25 = arith.constant 0.000000e+00 : f32
    %27 = vector.broadcast %cst_25 : f32 to vector<16x32xf32>
    %28 = arith.maximumf %26, %27 : vector<16x32xf32>
    %29 = math.absf %26 : vector<16x32xf32>
    %cst_26 = arith.constant 0.000000e+00 : f32
    %30 = vector.broadcast %cst_26 : f32 to vector<16x32xf32>
    %31 = arith.subf %30, %29 : vector<16x32xf32>
    %32 = math.exp %31 : vector<16x32xf32>
    %33 = math.log1p %32 : vector<16x32xf32>
    %34 = arith.addf %28, %33 : vector<16x32xf32>
    %cst_27 = arith.constant 9.99999997E-7 : f32
    %35 = vector.broadcast %cst_27 : f32 to vector<16x32xf32>
    %36 = arith.addf %34, %35 : vector<16x32xf32>
    %c0_28 = arith.constant 0 : index
    %c0_29 = arith.constant 0 : index
    %37 = vector.load %arg3[%c0_28, %c0_29] : memref<16x32xf32, #tpu.memory_space<vmem>>, vector<16x32xf32>
    %38 = arith.mulf %36, %37 : vector<16x32xf32>
    %39 = arith.addf %25, %38 : vector<16x32xf32>
    %cst_30 = arith.constant 0.000000e+00 : f32
    %40 = vector.broadcast %cst_30 : f32 to vector<16x64xf32>
    %41 = tpu.concatenate %39, %36, %40 in 1 : vector<16x32xf32>, vector<16x32xf32>, vector<16x64xf32> -> vector<16x128xf32>
    %c0_31 = arith.constant 0 : index
    %c0_32 = arith.constant 0 : index
    %42 = vector.load %arg10[%c0_31, %c0_32] : memref<16x128xf32, #tpu.memory_space<vmem>>, vector<16x128xf32>
    tpu.vector_store %arg10[%c0_31, %c0_32], %41 {strides = array<i32>} : memref<16x128xf32, #tpu.memory_space<vmem>>, vector<16x128xf32>,
    return
  }
  func.func @transform_0(%arg0: i32) -> (i32, i32) {
    %c0_i32 = arith.constant 0 : i32
    %c0_i32_0 = arith.constant 0 : i32
    return %arg0, %c0_i32 : i32, i32
  }
  func.func @transform_1(%arg0: i32) -> (i32, i32) {
    %c0_i32 = arith.constant 0 : i32
    %c0_i32_0 = arith.constant 0 : i32
    return %arg0, %c0_i32 : i32, i32
  }
  func.func @transform_2(%arg0: i32) -> (i32, i32) {
    %c0_i32 = arith.constant 0 : i32
    %c0_i32_0 = arith.constant 0 : i32
    return %arg0, %c0_i32 : i32, i32
  }
  func.func @transform_3(%arg0: i32) -> (i32, i32) {
    %c0_i32 = arith.constant 0 : i32
    %c0_i32_0 = arith.constant 0 : i32
    %c0_i32_1 = arith.constant 0 : i32
    return %c0_i32, %c0_i32_0 : i32, i32
  }
  func.func @transform_4(%arg0: i32) -> (i32, i32) {
    %c0_i32 = arith.constant 0 : i32
    %c0_i32_0 = arith.constant 0 : i32
    %c0_i32_1 = arith.constant 0 : i32
    return %c0_i32, %c0_i32_0 : i32, i32
  }
  func.func @transform_5(%arg0: i32) -> (i32, i32) {
    %c0_i32 = arith.constant 0 : i32
    %c0_i32_0 = arith.constant 0 : i32
    %c0_i32_1 = arith.constant 0 : i32
    return %c0_i32, %c0_i32_0 : i32, i32
  }
  func.func @transform_6(%arg0: i32) -> (i32, i32) {
    %c0_i32 = arith.constant 0 : i32
    %c0_i32_0 = arith.constant 0 : i32
    %c0_i32_1 = arith.constant 0 : i32
    return %c0_i32, %c0_i32_0 : i32, i32
  }
  func.func @transform_7(%arg0: i32) -> (i32, i32) {
    %c0_i32 = arith.constant 0 : i32
    %c0_i32_0 = arith.constant 0 : i32
    %c0_i32_1 = arith.constant 0 : i32
    return %c0_i32, %c0_i32_0 : i32, i32
  }
  func.func @transform_8(%arg0: i32) -> (i32, i32) {
    %c0_i32 = arith.constant 0 : i32
    %c0_i32_0 = arith.constant 0 : i32
    %c0_i32_1 = arith.constant 0 : i32
    return %c0_i32, %c0_i32_0 : i32, i32
  }
  func.func @transform_9(%arg0: i32) -> (i32, i32) {
    %c0_i32 = arith.constant 0 : i32
    %c0_i32_0 = arith.constant 0 : i32
    return %arg0, %c0_i32 : i32, i32
  }
}

</mosaic_0001>

<llo_original>
// kernel: prob_output_layer2.1
$region0: #{prob_output_layer2.1}
  #allocation0 [shape = 'u32[]', space=smem, size = 0x4, offset = 0x4, fixed_abs, tag = 'smem constant byte address 0x4 - core index']
  #allocation1 [shape = 'u32[72,128]{1,0:T(1,128)}', space=vmem, size = 0x9000, scoped, tag = 'internal scratch']
  %s0 = inlined_call_operand.hbm [shape: f32[16,32], index: 0, kind: input, shape index: {}]
  %s1 = inlined_call_operand.hbm [shape: f32[16,32], index: 1, kind: input, shape index: {}]
  %s2 = inlined_call_operand.hbm [shape: f32[16,32], index: 2, kind: input, shape index: {}]
  %s3 = inlined_call_operand.hbm [shape: f32[32,32], index: 3, kind: input, shape index: {}]
  %s4 = inlined_call_operand.hbm [shape: f32[32,32], index: 4, kind: input, shape index: {}]
  %s5 = inlined_call_operand.hbm [shape: f32[64,64], index: 5, kind: input, shape index: {}]
  %s6 = inlined_call_operand.hbm [shape: f32[64,64], index: 6, kind: input, shape index: {}]
  %s7 = inlined_call_operand.hbm [shape: f32[64,64], index: 7, kind: input, shape index: {}]
  %s8 = inlined_call_operand.hbm [shape: f32[64,128], index: 8, kind: input, shape index: {}]
  %s9 = inlined_call_operand.vmem [shape: f32[16,128], index: 9, kind: output, shape index: {}]
  %s10 = sld [smem:[#allocation0]]
  $region82: #{prob_output_layer2.1} parent=0
    _
  %s12 = ssub.s32 1, %s10
  %s13 = scalar_select 0, %s12, %s10
  $region1: #{prob_output_layer2.1} parent=0
    #allocation2 [shape = 'u8[8192]{0}', space=vmem, size = 0x2000, scoped, tag = 'input window, operand 0, single buffered']
    #allocation3 [shape = 's32[1]{0}', space=sflag, size = 0x4, scoped, tag = 'scoped memory for prob_output_layer2.1']
    #allocation4 [shape = 'u8[8192]{0}', space=vmem, size = 0x2000, scoped, tag = 'input window, operand 1, single buffered']
    #allocation5 [shape = 's32[1]{0}', space=sflag, size = 0x4, scoped, tag = 'scoped memory for prob_output_layer2.1']
    #allocation6 [shape = 'u8[8192]{0}', space=vmem, size = 0x2000, scoped, tag = 'input window, operand 2, single buffered']
    #allocation7 [shape = 'u8[16384]{0}', space=vmem, size = 0x4000, scoped, tag = 'input window, operand 3, single buffered']
    #allocation8 [shape = 's32[1]{0}', space=sflag, size = 0x4, scoped, tag = 'scoped memory for prob_output_layer2.1']
    #allocation9 [shape = 'u8[16384]{0}', space=vmem, size = 0x4000, scoped, tag = 'input window, operand 4, single buffered']
    #allocation10 [shape = 'u8[32768]{0}', space=vmem, size = 0x8000, scoped, tag = 'input window, operand 5, single buffered']
    #allocation11 [shape = 's32[1]{0}', space=sflag, size = 0x4, scoped, tag = 'scoped memory for prob_output_layer2.1']
    #allocation12 [shape = 'u8[32768]{0}', space=vmem, size = 0x8000, scoped, tag = 'input window, operand 6, single buffered']
    #allocation13 [shape = 'u8[32768]{0}', space=vmem, size = 0x8000, scoped, tag = 'input window, operand 7, single buffered']
    #allocation14 [shape = 's32[1]{0}', space=sflag, size = 0x4, scoped, tag = 'scoped memory for prob_output_layer2.1']
    #allocation15 [shape = 'u8[32768]{0}', space=vmem, size = 0x8000, scoped, tag = 'input window, operand 8, single buffered']
    %14 = vsyncpa [#allocation3], 0
    %15 = vsyncpa [#allocation5], 0
    %16 = vsyncpa [#allocation8], 0
    %17 = vsyncpa [#allocation11], 0
    %18 = vsyncpa [#allocation14], 0
    // Predicated region
    $region2: #{prob_output_layer2.1} parent=1 // pred_check
      _
    $region3: #{prob_output_layer2.1} parent=1 // pred_check_branch
      %20 = sbr.rel (0) target = $region5
    $region4: #{prob_output_layer2.1} parent=1 // pred_region
      %22 = vsyncadd [#allocation3], 0
      %s23 = sshll.u32 %s0, 4
      %s24 = int_to_ptr.hbm [resolvable:$true] %s23
      %s25 = sshll.u32 [#allocation2], 4
      %s26 = int_to_ptr.vmem [resolvable:$true] %s25
      %31 = dma.hbm_to_vmem [thread:$0]  %s24, 256, %s26, [#allocation3], 128, 128, 8
    $region5: #{prob_output_layer2.1} parent=1 // pred_fallthru
      _
    // Predicated region
    $region6: #{prob_output_layer2.1} parent=1 // pred_check
      _
    $region7: #{prob_output_layer2.1} parent=1 // pred_check_branch
      %33 = sbr.rel (0) target = $region9
    $region8: #{prob_output_layer2.1} parent=1 // pred_region
      %35 = vsyncadd [#allocation5], 0
      %s36 = sshll.u32 %s1, 4
      %s37 = int_to_ptr.hbm [resolvable:$true] %s36
      %s38 = sshll.u32 [#allocation4], 4
      %s39 = int_to_ptr.vmem [resolvable:$true] %s38
      %44 = dma.hbm_to_vmem [thread:$0]  %s37, 256, %s39, [#allocation5], 128, 128, 8
    $region9: #{prob_output_layer2.1} parent=1 // pred_fallthru
      _
    // Predicated region
    $region10: #{prob_output_layer2.1} parent=1 // pred_check
      _
    $region11: #{prob_output_layer2.1} parent=1 // pred_check_branch
      %46 = sbr.rel (0) target = $region13
    $region12: #{prob_output_layer2.1} parent=1 // pred_region
      %48 = vsyncadd [#allocation5], 0
      %s49 = sshll.u32 %s2, 4
      %s50 = int_to_ptr.hbm [resolvable:$true] %s49
      %s51 = sshll.u32 [#allocation6], 4
      %s52 = int_to_ptr.vmem [resolvable:$true] %s51
      %57 = dma.hbm_to_vmem [thread:$0]  %s50, 256, %s52, [#allocation5], 128, 128, 8
    $region13: #{prob_output_layer2.1} parent=1 // pred_fallthru
      _
    // Predicated region
    $region14: #{prob_output_layer2.1} parent=1 // pred_check
      _
    $region15: #{prob_output_layer2.1} parent=1 // pred_check_branch
      %59 = sbr.rel (0) target = $region17
    $region16: #{prob_output_layer2.1} parent=1 // pred_region
      %61 = vsyncadd [#allocation8], 0
      %s62 = sshll.u32 %s3, 4
      %s63 = int_to_ptr.hbm [resolvable:$true] %s62
      %s64 = sshll.u32 [#allocation7], 4
      %s65 = int_to_ptr.vmem [resolvable:$true] %s64
      %70 = dma.hbm_to_vmem [thread:$0]  %s63, 512, %s65, [#allocation8], 128, 128, 8
    $region17: #{prob_output_layer2.1} parent=1 // pred_fallthru
      _
    // Predicated region
    $region18: #{prob_output_layer2.1} parent=1 // pred_check
      _
    $region19: #{prob_output_layer2.1} parent=1 // pred_check_branch
      %72 = sbr.rel (0) target = $region21
    $region20: #{prob_output_layer2.1} parent=1 // pred_region
      %74 = vsyncadd [#allocation8], 0
      %s75 = sshll.u32 %s4, 4
      %s76 = int_to_ptr.hbm [resolvable:$true] %s75
      %s77 = sshll.u32 [#allocation9], 4
      %s78 = int_to_ptr.vmem [resolvable:$true] %s77
      %83 = dma.hbm_to_vmem [thread:$0]  %s76, 512, %s78, [#allocation8], 128, 128, 8
    $region21: #{prob_output_layer2.1} parent=1 // pred_fallthru
      _
    // Predicated region
    $region22: #{prob_output_layer2.1} parent=1 // pred_check
      _
    $region23: #{prob_output_layer2.1} parent=1 // pred_check_branch
      %85 = sbr.rel (0) target = $region25
    $region24: #{prob_output_layer2.1} parent=1 // pred_region
      %87 = vsyncadd [#allocation11], 0
      %s88 = sshll.u32 %s5, 4
      %s89 = int_to_ptr.hbm [resolvable:$true] %s88
      %s90 = sshll.u32 [#allocation10], 4
      %s91 = int_to_ptr.vmem [resolvable:$true] %s90
      %96 = dma.hbm_to_vmem [thread:$0]  %s89, 1024, %s91, [#allocation11], 128, 128, 8
    $region25: #{prob_output_layer2.1} parent=1 // pred_fallthru
      _
    // Predicated region
    $region26: #{prob_output_layer2.1} parent=1 // pred_check
      _
    $region27: #{prob_output_layer2.1} parent=1 // pred_check_branch
      %98 = sbr.rel (0) target = $region29
    $region28: #{prob_output_layer2.1} parent=1 // pred_region
      %100 = vsyncadd [#allocation11], 0
      %s101 = sshll.u32 %s6, 4
      %s102 = int_to_ptr.hbm [resolvable:$true] %s101
      %s103 = sshll.u32 [#allocation12], 4
      %s104 = int_to_ptr.vmem [resolvable:$true] %s103
      %109 = dma.hbm_to_vmem [thread:$0]  %s102, 1024, %s104, [#allocation11], 128, 128, 8
    $region29: #{prob_output_layer2.1} parent=1 // pred_fallthru
      _
    // Predicated region
    $region30: #{prob_output_layer2.1} parent=1 // pred_check
      _
    $region31: #{prob_output_layer2.1} parent=1 // pred_check_branch
      %111 = sbr.rel (0) target = $region33
    $region32: #{prob_output_layer2.1} parent=1 // pred_region
      %113 = vsyncadd [#allocation14], 0
      %s114 = sshll.u32 %s7, 4
      %s115 = int_to_ptr.hbm [resolvable:$true] %s114
      %s116 = sshll.u32 [#allocation13], 4
      %s117 = int_to_ptr.vmem [resolvable:$true] %s116
      %122 = dma.hbm_to_vmem [thread:$0]  %s115, 1024, %s117, [#allocation14], 128, 128, 8
    $region33: #{prob_output_layer2.1} parent=1 // pred_fallthru
      _
    // Predicated region
    $region34: #{prob_output_layer2.1} parent=1 // pred_check
      _
    $region35: #{prob_output_layer2.1} parent=1 // pred_check_branch
      %124 = sbr.rel (0) target = $region37
    $region36: #{prob_output_layer2.1} parent=1 // pred_region
      %126 = vsyncadd [#allocation14], 0
      %s127 = sshll.u32 %s8, 4
      %s128 = int_to_ptr.hbm [resolvable:$true] %s127
      %s129 = sshll.u32 [#allocation15], 4
      %s130 = int_to_ptr.vmem [resolvable:$true] %s129
      %135 = dma.hbm_to_vmem [thread:$0]  %s128, 1024, %s130, [#allocation14], 128, 128, 8
    $region37: #{prob_output_layer2.1} parent=1 // pred_fallthru
      _
    // Predicated region
    $region38: #{prob_output_layer2.1} parent=1 // pred_check
      _
    $region39: #{prob_output_layer2.1} parent=1 // pred_check_branch
      %137 = sbr.rel (0) target = $region41
    $region40: #{prob_output_layer2.1} parent=1 // pred_region
      %139 = dma.done [#allocation3], 256
    $region41: #{prob_output_layer2.1} parent=1 // pred_fallthru
      _
    // Predicated region
    $region42: #{prob_output_layer2.1} parent=1 // pred_check
      _
    $region43: #{prob_output_layer2.1} parent=1 // pred_check_branch
      %141 = sbr.rel (0) target = $region45
    $region44: #{prob_output_layer2.1} parent=1 // pred_region
      %143 = dma.done [#allocation5], 256
    $region45: #{prob_output_layer2.1} parent=1 // pred_fallthru
      _
    // Predicated region
    $region46: #{prob_output_layer2.1} parent=1 // pred_check
      _
    $region47: #{prob_output_layer2.1} parent=1 // pred_check_branch
      %145 = sbr.rel (0) target = $region49
    $region48: #{prob_output_layer2.1} parent=1 // pred_region
      %147 = dma.done [#allocation5], 256
    $region49: #{prob_output_layer2.1} parent=1 // pred_fallthru
      _
    // Predicated region
    $region50: #{prob_output_layer2.1} parent=1 // pred_check
      _
    $region51: #{prob_output_layer2.1} parent=1 // pred_check_branch
      %149 = sbr.rel (0) target = $region53
    $region52: #{prob_output_layer2.1} parent=1 // pred_region
      %151 = dma.done [#allocation8], 512
    $region53: #{prob_output_layer2.1} parent=1 // pred_fallthru
      _
    // Predicated region
    $region54: #{prob_output_layer2.1} parent=1 // pred_check
      _
    $region55: #{prob_output_layer2.1} parent=1 // pred_check_branch
      %153 = sbr.rel (0) target = $region57
    $region56: #{prob_output_layer2.1} parent=1 // pred_region
      %155 = dma.done [#allocation8], 512
    $region57: #{prob_output_layer2.1} parent=1 // pred_fallthru
      _
    // Predicated region
    $region58: #{prob_output_layer2.1} parent=1 // pred_check
      _
    $region59: #{prob_output_layer2.1} parent=1 // pred_check_branch
      %157 = sbr.rel (0) target = $region61
    $region60: #{prob_output_layer2.1} parent=1 // pred_region
      %159 = dma.done [#allocation11], 1024
    $region61: #{prob_output_layer2.1} parent=1 // pred_fallthru
      _
    // Predicated region
    $region62: #{prob_output_layer2.1} parent=1 // pred_check
      _
    $region63: #{prob_output_layer2.1} parent=1 // pred_check_branch
      %161 = sbr.rel (0) target = $region65
    $region64: #{prob_output_layer2.1} parent=1 // pred_region
      %163 = dma.done [#allocation11], 1024
    $region65: #{prob_output_layer2.1} parent=1 // pred_fallthru
      _
    // Predicated region
    $region66: #{prob_output_layer2.1} parent=1 // pred_check
      _
    $region67: #{prob_output_layer2.1} parent=1 // pred_check_branch
      %165 = sbr.rel (0) target = $region69
    $region68: #{prob_output_layer2.1} parent=1 // pred_region
      %167 = dma.done [#allocation14], 1024
    $region69: #{prob_output_layer2.1} parent=1 // pred_fallthru
      _
    // Predicated region
    $region70: #{prob_output_layer2.1} parent=1 // pred_check
      _
    $region71: #{prob_output_layer2.1} parent=1 // pred_check_branch
      %169 = sbr.rel (0) target = $region73
    $region72: #{prob_output_layer2.1} parent=1 // pred_region
      %171 = dma.done [#allocation14], 1024
    $region73: #{prob_output_layer2.1} parent=1 // pred_fallthru
      _
    %v172 = vld [vmem:[#allocation2] sm:$0xff]
    %v173 = vld [vmem:[#allocation2 + $0x8] sm:$0xff]
    %v174 = vld [vmem:[#allocation7] sm:$0xff]
    %v175 = vld [vmem:[#allocation7 + $0x8] sm:$0xff]
    %v176 = vld [vmem:[#allocation7 + $0x10] sm:$0xff]
    %v177 = vld [vmem:[#allocation7 + $0x18] sm:$0xff]
    %vm178 = vcmask 261120
    %v180 = vsel %vm178, %v172, 0
    %v183 = vsel %vm178, %v173, 0
    %185 = vmatpush.msra.mxu0 0.0
    %186 = vmatpush.msra.mxu0 0.0
    %187 = vmatpush.msra.mxu0 0.0
    %188 = vmatpush.msra.mxu0 0.0
    %189 = vmatpush.msra.mxu0 0.0
    %190 = vmatpush.msra.mxu0 0.0
    %191 = vmatpush.msra.mxu0 0.0
    %192 = vmatpush.msra.mxu0 0.0
    %193 = vmatpush.msra.mxu0 0.0
    %194 = vmatpush.msra.mxu0 0.0
    %195 = vmatpush.msra.mxu0 0.0
    %196 = vmatpush.msra.mxu0 0.0
    %197 = vmatpush.msra.mxu0 %v177
    %198 = vmatpush.msra.mxu0 %v176
    %199 = vmatpush.msra.mxu0 %v175
    %200 = vmatpush.msra.mxu0 %v174
    %201 = vmatmul.f32.gmra.mxu0 %v180
    %v202 = vpop.f32.mrf.mxu0
    %v203 = vadd.f32 0.0, %v202
    %204 = vmatmul.f32.gmra.mxu0 %v183
    %v205 = vpop.f32.mrf.mxu0
    %v206 = vadd.f32 0.0, %v205
    %207 = vdwg.mxu0
    %v208 = vmax.f32 %v203, 0.0
    %v209 = vmax.f32 %v206, 0.0
    %v210 = vld [vmem:[#allocation4] sm:$0xff]
    %v211 = vld [vmem:[#allocation4 + $0x8] sm:$0xff]
    %v212 = vld [vmem:[#allocation9] sm:$0xff]
    %v213 = vld [vmem:[#allocation9 + $0x8] sm:$0xff]
    %v214 = vld [vmem:[#allocation9 + $0x10] sm:$0xff]
    %v215 = vld [vmem:[#allocation9 + $0x18] sm:$0xff]
    %v217 = vsel %vm178, %v210, 0
    %v220 = vsel %vm178, %v211, 0
    %222 = vmatpush.msra.mxu0 0.0
    %223 = vmatpush.msra.mxu0 0.0
    %224 = vmatpush.msra.mxu0 0.0
    %225 = vmatpush.msra.mxu0 0.0
    %226 = vmatpush.msra.mxu0 0.0
    %227 = vmatpush.msra.mxu0 0.0
    %228 = vmatpush.msra.mxu0 0.0
    %229 = vmatpush.msra.mxu0 0.0
    %230 = vmatpush.msra.mxu0 0.0
    %231 = vmatpush.msra.mxu0 0.0
    %232 = vmatpush.msra.mxu0 0.0
    %233 = vmatpush.msra.mxu0 0.0
    %234 = vmatpush.msra.mxu0 %v215
    %235 = vmatpush.msra.mxu0 %v214
    %236 = vmatpush.msra.mxu0 %v213
    %237 = vmatpush.msra.mxu0 %v212
    %238 = vmatmul.f32.gmra.mxu0 %v217
    %v239 = vpop.f32.mrf.mxu0
    %v240 = vadd.f32 0.0, %v239
    %241 = vmatmul.f32.gmra.mxu0 %v220
    %v242 = vpop.f32.mrf.mxu0
    %v243 = vadd.f32 0.0, %v242
    %244 = vdwg.mxu0
    %v245 = vmax.f32 %v240, 0.0
    %v246 = vmax.f32 %v243, 0.0
    %249 = vrot.lane.b32.xlu0 %v245, 32
    %v250 = vpop.permute.xlu0 %249
    %251 = vrot.lane.b32.xlu0 %v246, 32
    %v252 = vpop.permute.xlu0 %251
    %v255 = vsel %vm178, %v208, %v250
    %v256 = vsel %vm178, %v209, %v252
    %v257 = vld [vmem:[#allocation10] sm:$0xff]
    %v258 = vld [vmem:[#allocation10 + $0x8] sm:$0xff]
    %v259 = vld [vmem:[#allocation10 + $0x10] sm:$0xff]
    %v260 = vld [vmem:[#allocation10 + $0x18] sm:$0xff]
    %v261 = vld [vmem:[#allocation10 + $0x20] sm:$0xff]
    %v262 = vld [vmem:[#allocation10 + $0x28] sm:$0xff]
    %v263 = vld [vmem:[#allocation10 + $0x30] sm:$0xff]
    %v264 = vld [vmem:[#allocation10 + $0x38] sm:$0xff]
    %vm265 = vcmask 523264
    %v267 = vsel %vm265, %v255, 0
    %v270 = vsel %vm265, %v256, 0
    %272 = vmatpush.msra.mxu0 0.0
    %273 = vmatpush.msra.mxu0 0.0
    %274 = vmatpush.msra.mxu0 0.0
    %275 = vmatpush.msra.mxu0 0.0
    %276 = vmatpush.msra.mxu0 0.0
    %277 = vmatpush.msra.mxu0 0.0
    %278 = vmatpush.msra.mxu0 0.0
    %279 = vmatpush.msra.mxu0 0.0
    %280 = vmatpush.msra.mxu0 %v264
    %281 = vmatpush.msra.mxu0 %v263
    %282 = vmatpush.msra.mxu0 %v262
    %283 = vmatpush.msra.mxu0 %v261
    %284 = vmatpush.msra.mxu0 %v260
    %285 = vmatpush.msra.mxu0 %v259
    %286 = vmatpush.msra.mxu0 %v258
    %287 = vmatpush.msra.mxu0 %v257
    %288 = vmatmul.f32.gmra.mxu0 %v267
    %v289 = vpop.f32.mrf.mxu0
    %v290 = vadd.f32 0.0, %v289
    %291 = vmatmul.f32.gmra.mxu0 %v270
    %v292 = vpop.f32.mrf.mxu0
    %v293 = vadd.f32 0.0, %v292
    %294 = vdwg.mxu0
    %v295 = vmax.f32 %v290, 0.0
    %v296 = vmax.f32 %v293, 0.0
    %v297 = vld [vmem:[#allocation12] sm:$0xff]
    %v298 = vld [vmem:[#allocation12 + $0x8] sm:$0xff]
    %v299 = vld [vmem:[#allocation12 + $0x10] sm:$0xff]
    %v300 = vld [vmem:[#allocation12 + $0x18] sm:$0xff]
    %v301 = vld [vmem:[#allocation12 + $0x20] sm:$0xff]
    %v302 = vld [vmem:[#allocation12 + $0x28] sm:$0xff]
    %v303 = vld [vmem:[#allocation12 + $0x30] sm:$0xff]
    %v304 = vld [vmem:[#allocation12 + $0x38] sm:$0xff]
    %v306 = vsel %vm265, %v295, 0
    %v309 = vsel %vm265, %v296, 0
    %311 = vmatpush.msra.mxu0 0.0
    %312 = vmatpush.msra.mxu0 0.0
    %313 = vmatpush.msra.mxu0 0.0
    %314 = vmatpush.msra.mxu0 0.0
    %315 = vmatpush.msra.mxu0 0.0
    %316 = vmatpush.msra.mxu0 0.0
    %317 = vmatpush.msra.mxu0 0.0
    %318 = vmatpush.msra.mxu0 0.0
    %319 = vmatpush.msra.mxu0 %v304
    %320 = vmatpush.msra.mxu0 %v303
    %321 = vmatpush.msra.mxu0 %v302
    %322 = vmatpush.msra.mxu0 %v301
    %323 = vmatpush.msra.mxu0 %v300
    %324 = vmatpush.msra.mxu0 %v299
    %325 = vmatpush.msra.mxu0 %v298
    %326 = vmatpush.msra.mxu0 %v297
    %327 = vmatmul.f32.gmra.mxu0 %v306
    %v328 = vpop.f32.mrf.mxu0
    %v329 = vadd.f32 0.0, %v328
    %330 = vmatmul.f32.gmra.mxu0 %v309
    %v331 = vpop.f32.mrf.mxu0
    %v332 = vadd.f32 0.0, %v331
    %333 = vdwg.mxu0
    %v334 = vmax.f32 %v329, 0.0
    %v335 = vmax.f32 %v332, 0.0
    %v336 = vld [vmem:[#allocation13] sm:$0xff]
    %v337 = vld [vmem:[#allocation13 + $0x8] sm:$0xff]
    %v338 = vld [vmem:[#allocation13 + $0x10] sm:$0xff]
    %v339 = vld [vmem:[#allocation13 + $0x18] sm:$0xff]
    %v340 = vld [vmem:[#allocation13 + $0x20] sm:$0xff]
    %v341 = vld [vmem:[#allocation13 + $0x28] sm:$0xff]
    %v342 = vld [vmem:[#allocation13 + $0x30] sm:$0xff]
    %v343 = vld [vmem:[#allocation13 + $0x38] sm:$0xff]
    %v345 = vsel %vm265, %v334, 0
    %v348 = vsel %vm265, %v335, 0
    %350 = vmatpush.msra.mxu0 0.0
    %351 = vmatpush.msra.mxu0 0.0
    %352 = vmatpush.msra.mxu0 0.0
    %353 = vmatpush.msra.mxu0 0.0
    %354 = vmatpush.msra.mxu0 0.0
    %355 = vmatpush.msra.mxu0 0.0
    %356 = vmatpush.msra.mxu0 0.0
    %357 = vmatpush.msra.mxu0 0.0
    %358 = vmatpush.msra.mxu0 %v343
    %359 = vmatpush.msra.mxu0 %v342
    %360 = vmatpush.msra.mxu0 %v341
    %361 = vmatpush.msra.mxu0 %v340
    %362 = vmatpush.msra.mxu0 %v339
    %363 = vmatpush.msra.mxu0 %v338
    %364 = vmatpush.msra.mxu0 %v337
    %365 = vmatpush.msra.mxu0 %v336
    %366 = vmatmul.f32.gmra.mxu0 %v345
    %v367 = vpop.f32.mrf.mxu0
    %v368 = vadd.f32 0.0, %v367
    %369 = vmatmul.f32.gmra.mxu0 %v348
    %v370 = vpop.f32.mrf.mxu0
    %v371 = vadd.f32 0.0, %v370
    %372 = vdwg.mxu0
    %v373 = vmax.f32 %v368, 0.0
    %v374 = vmax.f32 %v371, 0.0
    %v375 = vld [vmem:[#allocation15] sm:$0xff]
    %v376 = vld [vmem:[#allocation15 + $0x8] sm:$0xff]
    %v377 = vld [vmem:[#allocation15 + $0x10] sm:$0xff]
    %v378 = vld [vmem:[#allocation15 + $0x18] sm:$0xff]
    %v379 = vld [vmem:[#allocation15 + $0x20] sm:$0xff]
    %v380 = vld [vmem:[#allocation15 + $0x28] sm:$0xff]
    %v381 = vld [vmem:[#allocation15 + $0x30] sm:$0xff]
    %v382 = vld [vmem:[#allocation15 + $0x38] sm:$0xff]
    %v384 = vsel %vm265, %v373, 0
    %v387 = vsel %vm265, %v374, 0
    %389 = vmatpush.msra.mxu0 0.0
    %390 = vmatpush.msra.mxu0 0.0
    %391 = vmatpush.msra.mxu0 0.0
    %392 = vmatpush.msra.mxu0 0.0
    %393 = vmatpush.msra.mxu0 0.0
    %394 = vmatpush.msra.mxu0 0.0
    %395 = vmatpush.msra.mxu0 0.0
    %396 = vmatpush.msra.mxu0 0.0
    %397 = vmatpush.msra.mxu0 %v382
    %398 = vmatpush.msra.mxu0 %v381
    %399 = vmatpush.msra.mxu0 %v380
    %400 = vmatpush.msra.mxu0 %v379
    %401 = vmatpush.msra.mxu0 %v378
    %402 = vmatpush.msra.mxu0 %v377
    %403 = vmatpush.msra.mxu0 %v376
    %404 = vmatpush.msra.mxu0 %v375
    %405 = vmatmul.f32.gmra.mxu0 %v384
    %v406 = vpop.f32.mrf.mxu0
    %v407 = vadd.f32 0.0, %v406
    %408 = vmatmul.f32.gmra.mxu0 %v387
    %v409 = vpop.f32.mrf.mxu0
    %v410 = vadd.f32 0.0, %v409
    %411 = vdwg.mxu0
    %v412 = vmax.f32 %v407, 0.0
    %v413 = vmax.f32 %v410, 0.0
    %v414 = vand.u32 2147483647, %v407
    %v415 = vand.u32 2147483647, %v410
    %v416 = vsub.f32 0.0, %v414
    %v417 = vsub.f32 0.0, %v415
    %v418 = vmul.f32 %v416, 1.442695
    %v419 = vpow.pop %v418
    %v420 = vmul.f32 %v417, 1.442695
    %v421 = vpow.pop %v420
    %v422 = vadd.f32 %v419, 1.0
    %v423 = vlog2.pop %v422
    %v424 = vmul.f32 %v423, 0.6931472
    %v425 = vmul.f32 -0.5, %v419
    %v426 = vadd.f32 %v425, 1.0
    %v427 = vmul.f32 %v426, %v419
    %v428 = vand.u32 2147483647, %v419
    %vm429 = vcmp.lt.f32.partialorder %v428, 0.0004427343
    %v430 = vsel %vm429, %v427, %v424
    %v431 = vadd.f32 %v421, 1.0
    %v432 = vlog2.pop %v431
    %v433 = vmul.f32 %v432, 0.6931472
    %v434 = vmul.f32 -0.5, %v421
    %v435 = vadd.f32 %v434, 1.0
    %v436 = vmul.f32 %v435, %v421
    %v437 = vand.u32 2147483647, %v421
    %vm438 = vcmp.lt.f32.partialorder %v437, 0.0004427343
    %v439 = vsel %vm438, %v436, %v433
    %v440 = vadd.f32 %v412, %v430
    %v441 = vadd.f32 %v413, %v439
    %v442 = vadd.f32 %v440, 1e-06
    %v443 = vadd.f32 %v441, 1e-06
    %v444 = vld [vmem:[#allocation6] sm:$0xff]
    %v445 = vld [vmem:[#allocation6 + $0x8] sm:$0xff]
    %448 = vrot.lane.b32.xlu0 %v444, 32
    %v449 = vpop.permute.xlu0 %448
    %450 = vrot.lane.b32.xlu0 %v445, 32
    %v451 = vpop.permute.xlu0 %450
    %v454 = vmul.f32 %v442, %v449
    %v455 = vmul.f32 %v443, %v451
    %458 = vrot.lane.b32.xlu0 %v454, 96
    %v459 = vpop.permute.xlu0 %458
    %460 = vrot.lane.b32.xlu0 %v455, 96
    %v461 = vpop.permute.xlu0 %460
    %v464 = vadd.f32 %v407, %v459
    %v465 = vadd.f32 %v410, %v461
    %v466 = vsel %vm178, %v464, %v442
    %v467 = vsel %vm178, %v465, %v443
    %v468 = vsel %vm265, %v466, 0.0
    %v469 = vsel %vm265, %v467, 0.0
    %470 = vst [vmem:[%s9] sm:$0xff] %v468
    %471 = vst [vmem:[%s9 + $0x8] sm:$0xff] %v469
    // Predicated region
    $region74: #{prob_output_layer2.1} parent=1 // pred_check
      _
    $region75: #{prob_output_layer2.1} parent=1 // pred_check_branch
      %473 = sbr.rel (0) target = $region77
    $region76: #{prob_output_layer2.1} parent=1 // pred_region
      _
    $region77: #{prob_output_layer2.1} parent=1 // pred_fallthru
      _
    // Predicated region
    $region78: #{prob_output_layer2.1} parent=1 // pred_check
      _
    $region79: #{prob_output_layer2.1} parent=1 // pred_check_branch
      %475 = sbr.rel (0) target = $region81
    $region80: #{prob_output_layer2.1} parent=1 // pred_region
      _
    $region81: #{prob_output_layer2.1} parent=1 // pred_fallthru
      _
    %476 = vsyncpa [#allocation3], 1
    %477 = vsyncpa [#allocation5], 1
    %478 = vsyncpa [#allocation8], 1
    %479 = vsyncpa [#allocation11], 1
    %480 = vsyncpa [#allocation14], 1

</llo_original>
